<compile_context>
chip_gen: v5e
topology: v5e:2x2
jax: 0.10.0
libtpu: 0.0.40
codegen_flags: <defaults>
</compile_context>

<pallas_src>
import math
import functools

import jax
import jax.numpy as jnp
from jax.experimental import pallas as pl
from jax.experimental.pallas import tpu as pltpu


# ---------------------------------------------------------------------------
# Kernels
# ---------------------------------------------------------------------------
def _pe_add_kernel(x_ref, pos_ref, o_ref):
    # x_ref: (ts, B, E), pos_ref: (ts, 1, E) -> broadcast add over batch
    o_ref[...] = x_ref[...] + pos_ref[...]


def _pe_add_dropout_kernel(x_ref, pos_ref, bits_ref, o_ref, *, threshold, inv_keep):
    # Fused add + inverted dropout.  Per element: add, cmp (uint32), mul, select.
    y = x_ref[...] + pos_ref[...]
    keep = bits_ref[...] >= jnp.uint32(threshold)
    zero = jnp.asarray(0, dtype=y.dtype)
    o_ref[...] = jnp.where(keep, y * jnp.asarray(inv_keep, dtype=y.dtype), zero)


# ---------------------------------------------------------------------------
# Tiling / VMEM helpers
# ---------------------------------------------------------------------------
def _pad_to(v, m):
    return -(-v // m) * m


def _padded_block_bytes(block_shape, itemsize):
    # TPU vreg tiling pads the last two block dims to (8, 128).
    *lead, s2, s1 = block_shape
    n = 1
    for d in lead:
        n *= d
    return n * _pad_to(s2, 8) * _pad_to(s1, 128) * itemsize


def _pick_seq_tile(S, B, E, itemsize, *, target_block_bytes=2 << 20, min_steps=4):
    """Pick a sequence tile so the grid has several steps (pipelining) while each
    x block stays around a couple of MiB (good HBM efficiency, comfortably
    double-buffered on every TPU generation)."""
    per_s = _padded_block_bytes((1, B, E), itemsize)
    ts = max(1, target_block_bytes // per_s)
    if S > min_steps:
        ts = min(ts, -(-S // min_steps))  # ensure >= ~min_steps grid steps
    return int(min(ts, S))


def _vmem_limit_bytes(blocks):
    """blocks: list of (block_shape, itemsize). Inputs+outputs are double-buffered."""
    need = 2 * sum(_padded_block_bytes(s, isz) for s, isz in blocks)
    limit = need * 2 + (4 << 20)  # 2x headroom + compiler scratch
    # >= v5e's 16 MiB scoped default, <= v7x's 64 MiB physical VMEM.
    return int(min(max(limit, 16 << 20), 64 << 20))


# ---------------------------------------------------------------------------
# Module
# ---------------------------------------------------------------------------
class PositionalEncodingPallas:
    def __init__(self, emb_size: int = 512, dropout: float = 0.1, max_len: int = 5000):
        if emb_size % 2 != 0:
            raise ValueError(
                "Cannot use sin/cos positional encoding with odd dim (got dim ={:d}".format(emb_size)
            )
        self.emb_size = emb_size
        self.p = float(dropout)
        # Deterministic, parameter-free buffer, built exactly like the PyTorch module.
        position = jnp.arange(max_len, dtype=jnp.float32)[:, None]            # [max_len, 1]
        div_term = jnp.exp(
            jnp.arange(0, emb_size, 2, dtype=jnp.float32) * (-math.log(10000.0) / emb_size)
        )                                                                      # [emb/2]
        pe = jnp.zeros((max_len, emb_size), dtype=jnp.float32)
        pe = pe.at[:, 0::2].set(jnp.sin(position * div_term))
        pe = pe.at[:, 1::2].set(jnp.cos(position * div_term))
        self.pos_embedding = pe[:, None, :]                                    # [max_len, 1, emb]

    def __call__(self, token_embedding: jax.Array, *, training: bool = False, rng=None):
        S, B, E = token_embedding.shape
        assert E == self.emb_size
        dtype = token_embedding.dtype
        # Cast the table once to the activation dtype (halves pos DMA for bf16).
        pos = self.pos_embedding[:S].astype(dtype)                             # [S, 1, E]

        ts = _pick_seq_tile(S, B, E, dtype.itemsize)
        grid = (pl.cdiv(S, ts),)
        out_shape = jax.ShapeDtypeStruct((S, B, E), dtype)

        x_spec = pl.BlockSpec((ts, B, E), lambda i: (i, 0, 0))
        pos_spec = pl.BlockSpec((ts, 1, E), lambda i: (i, 0, 0))
        out_spec = pl.BlockSpec((ts, B, E), lambda i: (i, 0, 0))

        if (not training) or self.p == 0.0:
            vmem = _vmem_limit_bytes([((ts, B, E), dtype.itemsize),
                                      ((ts, 1, E), dtype.itemsize),
                                      ((ts, B, E), dtype.itemsize)])
            return pl.pallas_call(
                _pe_add_kernel,
                out_shape=out_shape,
                grid=grid,
                in_specs=[x_spec, pos_spec],
                out_specs=out_spec,
                input_output_aliases={0: 0},   # output reuses token_embedding's buffer
                compiler_params=pltpu.CompilerParams(
                    dimension_semantics=("parallel",),
                    vmem_limit_bytes=vmem),
            )(token_embedding, pos)

        # ---- training path: fused add + inverted dropout ----
        if rng is None:
            rng = jax.random.PRNGKey(0)
        bits = jax.random.bits(rng, (S, B, E), dtype=jnp.uint32)
        threshold = min(int(round(self.p * 2.0 ** 32)), (1 << 32) - 1)  # drop prob ~= p
        inv_keep = 1.0 / (1.0 - self.p)
        kernel = functools.partial(_pe_add_dropout_kernel,
                                   threshold=threshold, inv_keep=inv_keep)
        bits_spec = pl.BlockSpec((ts, B, E), lambda i: (i, 0, 0))
        vmem = _vmem_limit_bytes([((ts, B, E), dtype.itemsize),
                                  ((ts, 1, E), dtype.itemsize),
                                  ((ts, B, E), 4),                 # uint32 bits
                                  ((ts, B, E), dtype.itemsize)])
        return pl.pallas_call(
            kernel,
            out_shape=out_shape,
            grid=grid,
            in_specs=[x_spec, pos_spec, bits_spec],
            out_specs=out_spec,
            input_output_aliases={0: 0},
            compiler_params=pltpu.CompilerParams(
                dimension_semantics=("parallel",),   # independent steps -> v7x megacore
                vmem_limit_bytes=vmem),
        )(token_embedding, pos, bits)


if __name__ == "__main__":
    # Small shapes consistent with the module: seq=8, batch=2, emb=32
    S, B, E = 8, 2, 32
    module = PositionalEncodingPallas(emb_size=E, dropout=0.1, max_len=64)

    key = jax.random.PRNGKey(0)
    k_x, k_drop = jax.random.split(key)
    x = jax.random.normal(k_x, (S, B, E), dtype=jnp.float32)

    # Pure-JAX reference (computed before any kernel call).
    ref = x + module.pos_embedding[:S]

    # --- eval-mode forward (dropout = identity) ---
    y_eval = jax.block_until_ready(module(x, training=False))
    assert y_eval.shape == (S, B, E)
    assert jnp.allclose(y_eval, ref, atol=1e-6, rtol=1e-6), "eval-mode mismatch"

    # --- train-mode forward (dropout active; RNG stream differs from torch) ---
    y_train = jax.block_until_ready(module(x, training=True, rng=k_drop))
    assert y_train.shape == (S, B, E)
    assert bool(jnp.all(jnp.isfinite(y_train)))
    # every element is either dropped (exactly 0) or kept and scaled by 1/(1-p)
    scale = 1.0 / (1.0 - module.p)
    dropped = (y_train == 0)
    kept_ok = jnp.isclose(y_train, ref * scale, atol=1e-5, rtol=1e-5)
    assert bool(jnp.all(dropped | kept_ok)), "dropout semantics mismatch"

    print("KERNEL_OK")
</pallas_src>

<mosaic_0001>
module attributes {stable_mosaic.version = 11 : i64} {
  func.func @_pe_add_kernel(%arg0: i32, %arg1: memref<2x2x32xf32, #tpu.memory_space<vmem>>, %arg2: memref<2x1x32xf32, #tpu.memory_space<vmem>>, %arg3: memref<2x2x32xf32, #tpu.memory_space<vmem>>) attributes {dimension_semantics = [#tpu.dimension_semantics<parallel>], iteration_bounds = array<i64: 4>, scalar_prefetch = 0 : i64, scratch_operands = 0 : i64, tpu.core_type = #tpu.core_type<tc>, window_params = [{transform_indices = @transform_0, window_bounds = array<i64: 2, 2, 32>}, {transform_indices = @transform_1, window_bounds = array<i64: 2, 1, 32>}, {transform_indices = @transform_2, window_bounds = array<i64: 2, 2, 32>}]} {
    %c0 = arith.constant 0 : index
    %c0_0 = arith.constant 0 : index
    %c0_1 = arith.constant 0 : index
    %0 = vector.load %arg1[%c0, %c0_0, %c0_1] : memref<2x2x32xf32, #tpu.memory_space<vmem>>, vector<2x2x32xf32>
    %c0_2 = arith.constant 0 : index
    %c0_3 = arith.constant 0 : index
    %c0_4 = arith.constant 0 : index
    %1 = vector.load %arg2[%c0_2, %c0_3, %c0_4] : memref<2x1x32xf32, #tpu.memory_space<vmem>>, vector<2x1x32xf32>
    %2 = vector.broadcast %1 : vector<2x1x32xf32> to vector<2x2x32xf32>
    %3 = arith.addf %0, %2 : vector<2x2x32xf32>
    %c0_5 = arith.constant 0 : index
    %c0_6 = arith.constant 0 : index
    %c0_7 = arith.constant 0 : index
    %4 = vector.load %arg3[%c0_5, %c0_6, %c0_7] : memref<2x2x32xf32, #tpu.memory_space<vmem>>, vector<2x2x32xf32>
    tpu.vector_store %arg3[%c0_5, %c0_6, %c0_7], %3 {strides = array<i32>} : memref<2x2x32xf32, #tpu.memory_space<vmem>>, vector<2x2x32xf32>,
    return
  }
  func.func @transform_0(%arg0: i32) -> (i32, i32, i32) {
    %c0_i32 = arith.constant 0 : i32
    %c0_i32_0 = arith.constant 0 : i32
    %c0_i32_1 = arith.constant 0 : i32
    return %arg0, %c0_i32, %c0_i32_0 : i32, i32, i32
  }
  func.func @transform_1(%arg0: i32) -> (i32, i32, i32) {
    %c0_i32 = arith.constant 0 : i32
    %c0_i32_0 = arith.constant 0 : i32
    %c0_i32_1 = arith.constant 0 : i32
    return %arg0, %c0_i32, %c0_i32_0 : i32, i32, i32
  }
  func.func @transform_2(%arg0: i32) -> (i32, i32, i32) {
    %c0_i32 = arith.constant 0 : i32
    %c0_i32_0 = arith.constant 0 : i32
    %c0_i32_1 = arith.constant 0 : i32
    return %arg0, %c0_i32, %c0_i32_0 : i32, i32, i32
  }
}

</mosaic_0001>

<llo_original>
// kernel: tpu_custom_call.1
$region0: #{tpu_custom_call.1}
  #allocation0 [shape = 'u32[]', space=smem, size = 0x4, offset = 0x4, fixed_abs, tag = 'smem constant byte address 0x4 - core index']
  #allocation1 [shape = 'u32[72,128]{1,0:T(1,128)}', space=vmem, size = 0x9000, scoped, tag = 'internal scratch']
  %s0 = inlined_call_operand.hbm [shape: f32[8,2,32], index: 0, kind: input, shape index: {}, may-alias: {0,2}]
  %s1 = inlined_call_operand.vmem [shape: f32[8,1,32], index: 1, kind: input, shape index: {}]
  %s2 = inlined_call_operand.hbm [shape: f32[8,2,32], index: 2, kind: output, shape index: {}, may-alias: {0,2}]
  %s3 = sld [smem:[#allocation0]]
  $region45: #{tpu_custom_call.1} parent=0
    _
  %s5 = ssub.s32 1, %s3
  %s6 = scalar_select 0, %s5, %s3
  $region1: #{tpu_custom_call.1} parent=0
    #allocation2 [shape = 'u8[4096]{0}', space=vmem, size = 0x1000, scoped, tag = 'input window, operand 0']
    #allocation3 [shape = 's32[2]{0}', space=sflag, size = 0x8, scoped, tag = 'scoped memory for tpu_custom_call.1']
    #allocation4 [shape = 's32[2]{0}', space=sflag, size = 0x8, scoped, tag = 'scoped memory for tpu_custom_call.1']
    #allocation5 [shape = 'u8[4096]{0}', space=vmem, size = 0x1000, scoped, tag = 'output window, operand 0']
    %7 = vsyncpa [#allocation3], 0
    %s8 = scalar_lea.sflag [#allocation3], 1
    %9 = vsyncpa %s8, 0
    %10 = vsyncpa [#allocation4], 0
    %s11 = scalar_lea.sflag [#allocation4], 1
    %12 = vsyncpa %s11, 0
    loop: start=0, step=1, limit=6
    $region2: #{tpu_custom_call.1} parent=1 // loop_pre_header
      _
    $region3: #{tpu_custom_call.1} parent=1 // loop_header
      %s14 = sphi 0, %s18
      %p15 = scmp.ge.s32.totalorder %s14, 6
      %s24 = sphi 0, %s26
      %s27 = sphi 0, %s24
      %s28 = sphi 0, %s27
      %s44 = sphi 0, %s28
      %s50 = sphi 0, %s52
      %s53 = sphi 0, %s50
      %s54 = sphi 0, %s53
      %s70 = sphi 0, %s54
      %s76 = sphi 0, %s78
      %s79 = sphi 0, %s76
      %s80 = sphi 0, %s79
      %s96 = sphi 0, %s80
    $region4: #{tpu_custom_call.1} parent=1 // loop_header_branch
      %17 = sbr.rel (%p15) target = $region8
    $region5: #{tpu_custom_call.1} parent=1 // loop_body
      %s19 = ssub.s32 %s14, 1
      %s20 = ssub.s32 %s14, 2
      %s21 = sadd.s32 %s14, 1
      %s22 = ssub.s32 %s14, %s21
      %p23 = scmp.eq.s32.totalorder %s22, 0
      %s25 = sadd.s32 %s24, 1
      %s26 = scalar_select %p23, %s24, %s25
      %p29 = pneg %p23
      %p30 = scmp.eq.s32.totalorder %s14, 3
      %p31 = por %p29, %p30
      %p32 = scmp.ne.s32.totalorder %s24, %s27
      %p33 = scmp.eq.s32.totalorder %s14, 0
      %p34 = por %p32, %p33
      %p35 = scmp.ne.s32.totalorder %s24, %s27
      %p36 = scmp.eq.s32.totalorder %s19, 3
      %p37 = por %p35, %p36
      %p38 = scmp.ne.s32.totalorder %s27, %s28
      %p39 = scmp.eq.s32.totalorder %s19, 0
      %p40 = por %p38, %p39
      %p41 = scmp.ne.s32.totalorder %s27, %s28
      %p42 = scmp.eq.s32.totalorder %s20, 3
      %p43 = por %p41, %p42
      %p45 = scmp.ne.s32.totalorder %s28, %s44
      %p46 = scmp.eq.s32.totalorder %s20, 0
      %p47 = por %p45, %p46
      %s48 = ssub.s32 %s14, %s21
      %p49 = scmp.eq.s32.totalorder %s48, 0
      %s51 = sadd.s32 %s50, 1
      %s52 = scalar_select %p49, %s50, %s51
      %p55 = pneg %p49
      %p56 = scmp.eq.s32.totalorder %s14, 3
      %p57 = por %p55, %p56
      %p58 = scmp.ne.s32.totalorder %s50, %s53
      %p59 = scmp.eq.s32.totalorder %s14, 0
      %p60 = por %p58, %p59
      %p61 = scmp.ne.s32.totalorder %s50, %s53
      %p62 = scmp.eq.s32.totalorder %s19, 3
      %p63 = por %p61, %p62
      %p64 = scmp.ne.s32.totalorder %s53, %s54
      %p65 = scmp.eq.s32.totalorder %s19, 0
      %p66 = por %p64, %p65
      %p67 = scmp.ne.s32.totalorder %s53, %s54
      %p68 = scmp.eq.s32.totalorder %s20, 3
      %p69 = por %p67, %p68
      %p71 = scmp.ne.s32.totalorder %s54, %s70
      %p72 = scmp.eq.s32.totalorder %s20, 0
      %p73 = por %p71, %p72
      %s74 = ssub.s32 %s14, %s21
      %p75 = scmp.eq.s32.totalorder %s74, 0
      %s77 = sadd.s32 %s76, 1
      %s78 = scalar_select %p75, %s76, %s77
      %p81 = pneg %p75
      %p82 = scmp.eq.s32.totalorder %s14, 3
      %p83 = por %p81, %p82
      %p84 = scmp.ne.s32.totalorder %s76, %s79
      %p85 = scmp.eq.s32.totalorder %s14, 0
      %p86 = por %p84, %p85
      %p87 = scmp.ne.s32.totalorder %s76, %s79
      %p88 = scmp.eq.s32.totalorder %s19, 3
      %p89 = por %p87, %p88
      %p90 = scmp.ne.s32.totalorder %s79, %s80
      %p91 = scmp.eq.s32.totalorder %s19, 0
      %p92 = por %p90, %p91
      %p93 = scmp.ne.s32.totalorder %s79, %s80
      %p94 = scmp.eq.s32.totalorder %s20, 3
      %p95 = por %p93, %p94
      %p97 = scmp.ne.s32.totalorder %s80, %s96
      %p98 = scmp.eq.s32.totalorder %s20, 0
      %p99 = por %p97, %p98
      %p100 = scmp.le.s32.totalorder 1, %s14
      %p101 = scmp.lt.s32.totalorder %s14, 5
      %p102 = pnand %p100, %p101
      %p103 = pneg %p102
      // Predicated region
      $region9: #{tpu_custom_call.1} parent=5 // pred_check
        _
      $region10: #{tpu_custom_call.1} parent=5 // pred_check_branch
        %105 = sbr.rel (%p102) target = $region12
      $region11: #{tpu_custom_call.1} parent=5 // pred_region
        %s106 = ssub.s32 %s14, 1
      $region12: #{tpu_custom_call.1} parent=5 // pred_fallthru
        _
      %p107 = scmp.lt.s32.totalorder %s14, 4
      // Predicated region
      $region13: #{tpu_custom_call.1} parent=5 // pred_check
        %p108 = pneg %p107
      $region14: #{tpu_custom_call.1} parent=5 // pred_check_branch
        %110 = sbr.rel (%p108) target = $region16
      $region15: #{tpu_custom_call.1} parent=5 // pred_region
        // Predicated region
        $region17: #{tpu_custom_call.1} parent=15 // pred_check
          %p111 = pneg %p34
        $region18: #{tpu_custom_call.1} parent=15 // pred_check_branch
          %113 = sbr.rel (%p111) target = $region20
        $region19: #{tpu_custom_call.1} parent=15 // pred_region
          %s114 = sand.u32 %s24, 1
          %s115 = scalar_lea.sflag [#allocation3], %s114
          %s116 = sand.u32 %s24, 1
          %s117 = smul.addr %s116, 4
          %s118 = scalar_lea.vmem [#allocation2], %s117
          %s119 = smul.u32 2, %s14
          %121 = vsyncadd %s115, 0
          %s122 = smul.addr %s119, 2
          %s123 = scalar_lea.hbm %s0, %s122
          %s124 = sshll.u32 %s123, 4
          %s125 = int_to_ptr.hbm [resolvable:$true] %s124
          %s126 = sshll.u32 %s118, 4
          %s127 = int_to_ptr.vmem [resolvable:$true] %s126
          %132 = dma.hbm_to_vmem [thread:$0]  %s125, 64, %s127, %s115, 32, 32, 2
        $region20: #{tpu_custom_call.1} parent=15 // pred_fallthru
          _
        // Predicated region
        $region21: #{tpu_custom_call.1} parent=15 // pred_check
          %p133 = pneg %p60
        $region22: #{tpu_custom_call.1} parent=15 // pred_check_branch
          %135 = sbr.rel (%p133) target = $region24
        $region23: #{tpu_custom_call.1} parent=15 // pred_region
          %s136 = smul.u32 2, %s14
          %p137 = scmp.lt.s32.totalorder %s136, 7
          %s138 = scalar_select %p137, %s136, 7
          %s139 = scalar_lea.vmem %s1, %s138
          %s140 = smul.u32 2, %s14
        $region24: #{tpu_custom_call.1} parent=15 // pred_fallthru
          _
      $region16: #{tpu_custom_call.1} parent=5 // pred_fallthru
        _
      %p141 = scmp.le.s32.totalorder 1, %s14
      %p142 = scmp.lt.s32.totalorder %s14, 5
      %p143 = pnand %p141, %p142
      %p144 = pneg %p143
      // Predicated region
      $region25: #{tpu_custom_call.1} parent=5 // pred_check
        _
      $region26: #{tpu_custom_call.1} parent=5 // pred_check_branch
        %146 = sbr.rel (%p143) target = $region28
      $region27: #{tpu_custom_call.1} parent=5 // pred_region
        %s147 = ssub.s32 %s14, 1
        %s148 = sand.u32 %s27, 1
        %s149 = scalar_lea.sflag [#allocation3], %s148
        %s150 = sand.u32 %s27, 1
        %s151 = smul.addr %s150, 4
        %s152 = scalar_lea.vmem [#allocation2], %s151
        // Predicated region
        $region29: #{tpu_custom_call.1} parent=27 // pred_check
          %p153 = pneg %p40
        $region30: #{tpu_custom_call.1} parent=27 // pred_check_branch
          %155 = sbr.rel (%p153) target = $region32
        $region31: #{tpu_custom_call.1} parent=27 // pred_region
          %157 = dma.done %s149, 64
        $region32: #{tpu_custom_call.1} parent=27 // pred_fallthru
          _
        %s158 = sand.u32 %s27, 1
        %s159 = scalar_lea.sflag [#allocation3], %s158
        %s160 = sand.u32 %s27, 1
        %s161 = smul.addr %s160, 4
        %s162 = scalar_lea.vmem [#allocation2], %s161
        %p163 = pneg %p40
        %p164 = pneg %p37
        %s165 = smul.u32 2, %s19
        %p166 = scmp.lt.s32.totalorder %s165, 7
        %s167 = scalar_select %p166, %s165, 7
        %s168 = scalar_lea.vmem %s1, %s167
        %p169 = pneg %p66
        %p170 = pneg %p63
        %p171 = pneg %p92
        %p172 = pneg %p89
        %s173 = sand.u32 %s79, 1
        %s174 = scalar_lea.sflag [#allocation4], %s173
        %s175 = sand.u32 %s79, 1
        %s176 = smul.addr %s175, 4
        %s177 = scalar_lea.vmem [#allocation5], %s176
        %s178 = smul.u32 2, %s19
        %s179 = smul.u32 2, %s19
        %p180 = scmp.lt.s32.totalorder %s179, 7
        %s181 = scalar_select %p180, %s179, 7
        %s182 = scalar_lea.vmem %s1, %s181
        %s183 = smul.u32 2, %s19
        %s184 = smul.u32 2, %s19
        %v185 = vld [vmem:[%s152] sm:$0x3]
        %v186 = vld [vmem:[%s152 + $0x2] sm:$0x3]
        %v187 = vld [vmem:[%s182] sm:$0x1]
        %v188 = vld [vmem:[%s182 + $0x1] sm:$0x1]
        %v191 = vperm.slane %v187, 0
        %v192 = vperm.slane %v188, 0
        %v195 = vadd.f32 %v185, %v191
        %v196 = vadd.f32 %v186, %v192
        %vm197 = vcmask 254976
        %198 = vst.msk [vmem:[%s177] sm:$0x3] %vm197, %v195
        %199 = vst.msk [vmem:[%s177 + $0x2] sm:$0x3] %vm197, %v196
        %s200 = sand.u32 %s79, 1
        %s201 = scalar_lea.sflag [#allocation4], %s200
        %s202 = sand.u32 %s79, 1
        %s203 = smul.addr %s202, 4
        %s204 = scalar_lea.vmem [#allocation5], %s203
        // Predicated region
        $region33: #{tpu_custom_call.1} parent=27 // pred_check
          %p205 = pneg %p89
        $region34: #{tpu_custom_call.1} parent=27 // pred_check_branch
          %207 = sbr.rel (%p205) target = $region36
        $region35: #{tpu_custom_call.1} parent=27 // pred_region
          %s208 = smul.u32 2, %s19
          %210 = vsyncadd %s201, 0
          %s211 = smul.addr %s208, 2
          %s212 = scalar_lea.hbm %s2, %s211
          %s213 = sshll.u32 %s204, 4
          %s214 = int_to_ptr.vmem [resolvable:$true] %s213
          %s215 = sshll.u32 %s212, 4
          %s216 = int_to_ptr.hbm [resolvable:$true] %s215
          %221 = dma.vmem_to_hbm [thread:$0]  %s214, 64, %s216, %s201, 32, 32, 2
        $region36: #{tpu_custom_call.1} parent=27 // pred_fallthru
          _
      $region28: #{tpu_custom_call.1} parent=5 // pred_fallthru
        _
      %p222 = scmp.le.s32.totalorder 2, %s14
      // Predicated region
      $region37: #{tpu_custom_call.1} parent=5 // pred_check
        %p223 = pneg %p222
      $region38: #{tpu_custom_call.1} parent=5 // pred_check_branch
        %225 = sbr.rel (%p223) target = $region40
      $region39: #{tpu_custom_call.1} parent=5 // pred_region
        %s226 = ssub.s32 %s14, 2
        // Predicated region
        $region41: #{tpu_custom_call.1} parent=39 // pred_check
          %p227 = pneg %p95
        $region42: #{tpu_custom_call.1} parent=39 // pred_check_branch
          %229 = sbr.rel (%p227) target = $region44
        $region43: #{tpu_custom_call.1} parent=39 // pred_region
          %s230 = sand.u32 %s80, 1
          %s231 = scalar_lea.sflag [#allocation4], %s230
          %s232 = sand.u32 %s80, 1
          %s233 = smul.addr %s232, 4
          %s234 = scalar_lea.vmem [#allocation5], %s233
          %236 = dma.done %s231, 64
        $region44: #{tpu_custom_call.1} parent=39 // pred_fallthru
          _
      $region40: #{tpu_custom_call.1} parent=5 // pred_fallthru
        _
    $region6: #{tpu_custom_call.1} parent=1 // loop_footer
      %s18 = sadd.s32 1, %s14
    $region7: #{tpu_custom_call.1} parent=1 // loop_footer_branch
      %13 = sbr.rel target = $region3
    $region8: #{tpu_custom_call.1} parent=1 // loop_exit
      _
    %237 = vsyncpa [#allocation3], 1
    %s238 = scalar_lea.sflag [#allocation3], 1
    %239 = vsyncpa %s238, 1
    %240 = vsyncpa [#allocation4], 1
    %s241 = scalar_lea.sflag [#allocation4], 1
    %242 = vsyncpa %s241, 1

</llo_original>
